<compile_context>
chip_gen: v6e
topology: v6e:2x2x1
jax: 0.10.0
libtpu: 0.0.40
codegen_flags: <defaults>
</compile_context>

<pallas_src>
import jax
import jax.numpy as jnp
from jax.experimental import pallas as pl
from jax.experimental.pallas import tpu as pltpu


def _round_up(x, m):
    return ((x + m - 1) // m) * m


def _cdiv(a, b):
    return (a + b - 1) // b


_VMEM_BUDGET = 20 << 20        # conservative tile budget across v5e/v6e/v7x
_VMEM_LIMIT_BYTES = 32 << 20   # explicit scoped limit (v5e default is only 16 MiB)


# ---------------------------------------------------------------------------
# Kernels
# ---------------------------------------------------------------------------

def _linear_kernel_single_k(x_ref, wt_ref, b_ref, o_ref):
    # Whole feature axis in one block: y_tile = x_tile @ W^T + b.
    # No accumulator scratch, no zero-init, no epilogue add pass.
    o_ref[...] = (
        jnp.dot(x_ref[...], wt_ref[...], preferred_element_type=jnp.float32)
        + b_ref[...]
    ).astype(o_ref.dtype)


def _make_tiled_k_kernel(tk, d_in):
    needs_tail_mask = (d_in % tk) != 0

    def kernel(x_ref, wt_ref, b_ref, o_ref, acc_ref):
        k = pl.program_id(1)

        @pl.when(k == 0)
        def _():
            # Fold bias into the accumulator init (saves a separate add pass).
            acc_ref[...] = jnp.broadcast_to(b_ref[...], acc_ref.shape)

        x = x_ref[...]
        if needs_tail_mask:
            # The last K tile of x reads past d_in (undefined data). Mask it so
            # NaN/Inf garbage cannot poison the accumulator (W's padded K rows
            # are zero, but 0 * NaN would still be NaN).
            col = k * tk + jax.lax.broadcasted_iota(jnp.int32, x.shape, 1)
            x = jnp.where(col < d_in, x, jnp.zeros_like(x))

        acc_ref[...] += jnp.dot(x, wt_ref[...], preferred_element_type=jnp.float32)

        @pl.when(k == pl.num_programs(1) - 1)
        def _():
            o_ref[...] = acc_ref[...].astype(o_ref.dtype)

    return kernel


# ---------------------------------------------------------------------------
# Tile selection
# ---------------------------------------------------------------------------

def _select_tiles(batch, d_in, d_out_pad, itemsize):
    # Dtype-aware sublane multiple: f32 -> 8, bf16 -> 16, int8/fp8 -> 32.
    sub = max(8, 32 // itemsize)

    def vmem_bytes(tb, tk, nk):
        b = 2 * tb * tk * itemsize            # x tile (double-buffered)
        b += 2 * tk * d_out_pad * itemsize    # W^T tile
        b += 2 * d_out_pad * 4                # bias (f32)
        b += 2 * tb * d_out_pad * itemsize    # output tile
        if nk > 1:
            b += tb * d_out_pad * 4           # f32 accumulator scratch
        return b

    # Batch tile: target <=~1024 rows/tile and an even number of tiles for
    # large batches so both v7x TensorCores get work on the "parallel" axis.
    n_groups = 2 * max(1, _cdiv(batch, 2048))
    tb = max(sub, _round_up(_cdiv(batch, n_groups), sub))
    tb = min(tb, _round_up(batch, sub))

    def shrink_tb(tb_, tk, nk):
        while tb_ > sub and vmem_bytes(tb_, tk, nk) > _VMEM_BUDGET:
            tb_ = max(sub, _round_up(tb_ // 2, sub))
        return tb_

    # Fast path: whole K as a single block (no x copy in HBM, no accumulator)
    # whenever it fits the VMEM budget without collapsing the batch tile.
    tb1 = shrink_tb(tb, d_in, 1)
    if vmem_bytes(tb1, d_in, 1) <= _VMEM_BUDGET and (tb1 >= min(tb, 128) or d_in <= 2048):
        return tb1, d_in, 1

    # Tiled-K path: TK a multiple of 128 (<= 512) chosen to minimize K padding.
    u = _cdiv(d_in, 128)
    best = None
    for t in range(4, 0, -1):
        nk = _cdiv(u, t)
        pad = nk * t - u
        if best is None or pad < best[0]:
            best = (pad, t * 128, nk)
    _, tk, nk = best
    tb2 = shrink_tb(tb, tk, nk)
    return tb2, tk, nk


# ---------------------------------------------------------------------------
# Wrapper
# ---------------------------------------------------------------------------

def logistic_regression_forward(x, weight, bias):
    """Pallas equivalent of torch.nn.Linear(input_dim, output_dim)(x).

    x:      (batch, input_dim)
    weight: (output_dim, input_dim)   (PyTorch Linear convention)
    bias:   (output_dim,)
    returns (batch, output_dim)
    """
    batch, d_in = x.shape
    d_out = weight.shape[0]
    dtype = x.dtype
    itemsize = jnp.dtype(dtype).itemsize

    # Lane-dense output padding (multiple of 128) -> unmasked vector stores.
    d_out_pad = _round_up(d_out, 128)

    tb, tk, nk = _select_tiles(batch, d_in, d_out_pad, itemsize)
    n_b = _cdiv(batch, tb)   # batch remainder handled by the grid; x never copied

    # Pre-transpose weight once to (d_in, d_out) so the kernel issues a
    # canonical (M,K)@(K,N) MXU matmul.  Note: cast to x.dtype (slight numeric
    # deviation from torch when x is lower precision than the parameters).
    w_t = weight.T.astype(dtype)
    b_row = bias.astype(jnp.float32).reshape(1, d_out)
    if d_out_pad != d_out:
        w_t = jnp.pad(w_t, ((0, 0), (0, d_out_pad - d_out)))
        b_row = jnp.pad(b_row, ((0, 0), (0, d_out_pad - d_out)))

    flops = 2 * batch * d_in * d_out_pad

    if nk == 1:
        bytes_accessed = (
            batch * d_in * itemsize
            + d_in * d_out_pad * itemsize
            + d_out_pad * 4
            + batch * d_out_pad * itemsize
        )
        out_p = pl.pallas_call(
            _linear_kernel_single_k,
            out_shape=jax.ShapeDtypeStruct((batch, d_out_pad), dtype),
            grid=(n_b,),
            in_specs=[
                pl.BlockSpec((tb, d_in), lambda i: (i, 0)),           # x tile
                pl.BlockSpec((d_in, d_out_pad), lambda i: (0, 0)),    # W^T (resident)
                pl.BlockSpec((1, d_out_pad), lambda i: (0, 0)),       # bias (resident)
            ],
            out_specs=pl.BlockSpec((tb, d_out_pad), lambda i: (i, 0)),
            compiler_params=pltpu.CompilerParams(
                dimension_semantics=("parallel",),
                vmem_limit_bytes=_VMEM_LIMIT_BYTES,
            ),
            cost_estimate=pl.CostEstimate(
                flops=flops, transcendentals=0, bytes_accessed=bytes_accessed
            ),
        )(x, w_t, b_row)
    else:
        # Pad only W^T's K axis with zeros up to nk*tk (weights are tiny).
        # x is NOT padded; its K tail is masked inside the kernel instead.
        k_pad = nk * tk
        if k_pad != d_in:
            w_t = jnp.pad(w_t, ((0, k_pad - d_in), (0, 0)))
        bytes_accessed = (
            batch * d_in * itemsize
            + n_b * k_pad * d_out_pad * itemsize   # W^T re-streamed per batch tile
            + d_out_pad * 4
            + batch * d_out_pad * itemsize
        )
        out_p = pl.pallas_call(
            _make_tiled_k_kernel(tk, d_in),
            out_shape=jax.ShapeDtypeStruct((batch, d_out_pad), dtype),
            grid=(n_b, nk),
            in_specs=[
                pl.BlockSpec((tb, tk), lambda i, k: (i, k)),           # x tile
                pl.BlockSpec((tk, d_out_pad), lambda i, k: (k, 0)),    # W^T K-tile
                pl.BlockSpec((1, d_out_pad), lambda i, k: (0, 0)),     # bias
            ],
            out_specs=pl.BlockSpec((tb, d_out_pad), lambda i, k: (i, 0)),
            scratch_shapes=[pltpu.VMEM((tb, d_out_pad), jnp.float32)],
            compiler_params=pltpu.CompilerParams(
                dimension_semantics=("parallel", "arbitrary"),
                vmem_limit_bytes=_VMEM_LIMIT_BYTES,
            ),
            cost_estimate=pl.CostEstimate(
                flops=flops, transcendentals=0, bytes_accessed=bytes_accessed
            ),
        )(x, w_t, b_row)

    # Strip output-lane padding (no batch padding was ever added).
    return out_p[:, :d_out]


if __name__ == "__main__":
    key = jax.random.PRNGKey(0)

    def run_case(key, batch, input_dim, output_dim):
        kx, kw, kb = jax.random.split(key, 3)
        x = jax.random.normal(kx, (batch, input_dim), dtype=jnp.float32)
        # torch.nn.Linear-style uniform(-1/sqrt(fan_in), 1/sqrt(fan_in)) init.
        bound = 1.0 / (input_dim ** 0.5)
        weight = jax.random.uniform(
            kw, (output_dim, input_dim), dtype=jnp.float32,
            minval=-bound, maxval=bound,
        )
        bias = jax.random.uniform(
            kb, (output_dim,), dtype=jnp.float32, minval=-bound, maxval=bound
        )
        out = jax.block_until_ready(logistic_regression_forward(x, weight, bias))
        ref = x @ weight.T + bias
        assert out.shape == (batch, output_dim)
        assert jnp.allclose(out, ref, atol=1e-5, rtol=1e-5)

    # Shapes consistent with LogisticRegression(input_dim, output_dim).
    run_case(key, batch=8, input_dim=32, output_dim=16)
    # Unaligned batch / feature / class counts (exercises partial grid blocks).
    run_case(jax.random.PRNGKey(1), batch=37, input_dim=50, output_dim=3)

    print("KERNEL_OK")
</pallas_src>

<mosaic_0001>
module attributes {stable_mosaic.version = 11 : i64} {
  func.func @_linear_kernel_single_k(%arg0: i32, %arg1: memref<8x32xf32, #tpu.memory_space<vmem>>, %arg2: memref<32x128xf32, #tpu.memory_space<vmem>>, %arg3: memref<1x128xf32, #tpu.memory_space<vmem>>, %arg4: memref<8x128xf32, #tpu.memory_space<vmem>>) attributes {dimension_semantics = [#tpu.dimension_semantics<parallel>], iteration_bounds = array<i64: 1>, scalar_prefetch = 0 : i64, scratch_operands = 0 : i64, tpu.core_type = #tpu.core_type<tc>, window_params = [{transform_indices = @transform_0, window_bounds = array<i64: 8, 32>}, {pipeline_mode = #tpu.pipeline_mode<synchronous>, transform_indices = @transform_1, window_bounds = array<i64: 32, 128>}, {pipeline_mode = #tpu.pipeline_mode<synchronous>, transform_indices = @transform_2, window_bounds = array<i64: 1, 128>}, {transform_indices = @transform_3, window_bounds = array<i64: 8, 128>}]} {
    %c0 = arith.constant 0 : index
    %c0_0 = arith.constant 0 : index
    %0 = vector.load %arg1[%c0, %c0_0] : memref<8x32xf32, #tpu.memory_space<vmem>>, vector<8x32xf32>
    %c0_1 = arith.constant 0 : index
    %c0_2 = arith.constant 0 : index
    %1 = vector.load %arg2[%c0_1, %c0_2] : memref<32x128xf32, #tpu.memory_space<vmem>>, vector<32x128xf32>
    %cst = arith.constant dense<0.000000e+00> : vector<8x128xf32>
    %2 = tpu.matmul %0, %1, %cst {dimension_numbers = #tpu.dot_dimension_numbers<[1], [0], [0], [1], [0, 0, 1, 1], [], []>} : vector<8x32xf32>, vector<32x128xf32>, vector<8x128xf32> -> vector<8x128xf32>
    %c0_3 = arith.constant 0 : index
    %c0_4 = arith.constant 0 : index
    %3 = vector.load %arg3[%c0_3, %c0_4] : memref<1x128xf32, #tpu.memory_space<vmem>>, vector<1x128xf32>
    %4 = vector.broadcast %3 : vector<1x128xf32> to vector<8x128xf32>
    %5 = arith.addf %2, %4 : vector<8x128xf32>
    %c0_5 = arith.constant 0 : index
    %c0_6 = arith.constant 0 : index
    %6 = vector.load %arg4[%c0_5, %c0_6] : memref<8x128xf32, #tpu.memory_space<vmem>>, vector<8x128xf32>
    tpu.vector_store %arg4[%c0_5, %c0_6], %5 {strides = array<i32>} : memref<8x128xf32, #tpu.memory_space<vmem>>, vector<8x128xf32>,
    return
  }
  func.func @transform_0(%arg0: i32) -> (i32, i32) {
    %c0_i32 = arith.constant 0 : i32
    %c0_i32_0 = arith.constant 0 : i32
    return %arg0, %c0_i32 : i32, i32
  }
  func.func @transform_1(%arg0: i32) -> (i32, i32) {
    %c0_i32 = arith.constant 0 : i32
    %c0_i32_0 = arith.constant 0 : i32
    %c0_i32_1 = arith.constant 0 : i32
    return %c0_i32, %c0_i32_0 : i32, i32
  }
  func.func @transform_2(%arg0: i32) -> (i32, i32) {
    %c0_i32 = arith.constant 0 : i32
    %c0_i32_0 = arith.constant 0 : i32
    %c0_i32_1 = arith.constant 0 : i32
    return %c0_i32, %c0_i32_0 : i32, i32
  }
  func.func @transform_3(%arg0: i32) -> (i32, i32) {
    %c0_i32 = arith.constant 0 : i32
    %c0_i32_0 = arith.constant 0 : i32
    return %arg0, %c0_i32 : i32, i32
  }
}

</mosaic_0001>

<llo_original>
// kernel: tpu_custom_call.1
$region0: #{tpu_custom_call.1}
  #allocation0 [shape = 'u32[]', space=smem, size = 0x4, offset = 0x4, fixed_abs, tag = 'smem constant byte address 0x4 - core index']
  #allocation1 [shape = 'u32[144,128]{1,0:T(1,128)}', space=vmem, size = 0x12000, scoped, tag = 'internal scratch']
  %s0 = inlined_call_operand.hbm [shape: f32[8,32], index: 0, kind: input, shape index: {}]
  %s1 = inlined_call_operand.hbm [shape: f32[32,128], index: 1, kind: input, shape index: {}]
  %s2 = inlined_call_operand.vmem [shape: f32[1,128], index: 2, kind: input, shape index: {}]
  %s3 = inlined_call_operand.hbm [shape: f32[8,128], index: 3, kind: output, shape index: {}]
  %s4 = sld [smem:[#allocation0]]
  $region30: #{tpu_custom_call.1} parent=0
    _
  %s6 = ssub.s32 1, %s4
  %s7 = scalar_select 0, %s6, %s4
  $region1: #{tpu_custom_call.1} parent=0
    #allocation2 [shape = 'u8[4096]{0}', space=vmem, size = 0x1000, scoped, tag = 'input window, operand 0, single buffered']
    #allocation3 [shape = 's32[1]{0}', space=sflag, size = 0x4, scoped, tag = 'scoped memory for tpu_custom_call.1']
    #allocation4 [shape = 's32[1]{0}', space=sflag, size = 0x4, scoped, tag = 'scoped memory for tpu_custom_call.1']
    #allocation5 [shape = 'u8[16384]{0}', space=vmem, size = 0x4000, scoped, tag = 'input window, operand 1, single buffered']
    #allocation6 [shape = 's32[1]{0}', space=sflag, size = 0x4, scoped, tag = 'scoped memory for tpu_custom_call.1']
    #allocation7 [shape = 'u8[4096]{0}', space=vmem, size = 0x1000, scoped, tag = 'output window, operand 0, single buffered']
    %8 = vsyncpa [#allocation3], 0
    %9 = vsyncpa [#allocation6], 0
    %10 = vsyncpa [#allocation4], 0
    // Predicated region
    $region2: #{tpu_custom_call.1} parent=1 // pred_check
      _
    $region3: #{tpu_custom_call.1} parent=1 // pred_check_branch
      %12 = sbr.rel (0) target = $region5
    $region4: #{tpu_custom_call.1} parent=1 // pred_region
      %s14 = ssub.s32 128, 128
      %15 = vsyncadd [#allocation3], %s14
      %s17 = sshll.u32 [#allocation2], 4
      %s18 = int_to_ptr.vmem [resolvable:$true] %s17
      %20 = dma.hbm_to_vmem [thread:$0]  %s0, 128, %s18, [#allocation3]
    $region5: #{tpu_custom_call.1} parent=1 // pred_fallthru
      _
    // Predicated region
    $region6: #{tpu_custom_call.1} parent=1 // pred_check
      _
    $region7: #{tpu_custom_call.1} parent=1 // pred_check_branch
      %22 = sbr.rel (0) target = $region9
    $region8: #{tpu_custom_call.1} parent=1 // pred_region
      %s24 = ssub.s32 512, 512
      %25 = vsyncadd [#allocation6], %s24
      %s26 = sshll.u32 [#allocation5], 4
      %s27 = int_to_ptr.vmem [resolvable:$true] %s26
      %32 = dma.hbm_to_vmem [thread:$0]  %s1, 512, %s27, [#allocation6], 128, 128, 8
    $region9: #{tpu_custom_call.1} parent=1 // pred_fallthru
      _
    // Predicated region
    $region10: #{tpu_custom_call.1} parent=1 // pred_check
      _
    $region11: #{tpu_custom_call.1} parent=1 // pred_check_branch
      %34 = sbr.rel (0) target = $region13
    $region12: #{tpu_custom_call.1} parent=1 // pred_region
      _
    $region13: #{tpu_custom_call.1} parent=1 // pred_fallthru
      _
    // Predicated region
    $region14: #{tpu_custom_call.1} parent=1 // pred_check
      _
    $region15: #{tpu_custom_call.1} parent=1 // pred_check_branch
      %36 = sbr.rel (0) target = $region17
    $region16: #{tpu_custom_call.1} parent=1 // pred_region
      %37 = dma.done [#allocation3], 128
    $region17: #{tpu_custom_call.1} parent=1 // pred_fallthru
      _
    // Predicated region
    $region18: #{tpu_custom_call.1} parent=1 // pred_check
      _
    $region19: #{tpu_custom_call.1} parent=1 // pred_check_branch
      %39 = sbr.rel (0) target = $region21
    $region20: #{tpu_custom_call.1} parent=1 // pred_region
      %40 = dma.done [#allocation6], 512
    $region21: #{tpu_custom_call.1} parent=1 // pred_fallthru
      _
    %v41 = vld [vmem:[#allocation2] sm:$0xff]
    %v42 = vld [vmem:[#allocation5] sm:$0xff]
    %v43 = vld [vmem:[#allocation5 + $0x8] sm:$0xff]
    %v44 = vld [vmem:[#allocation5 + $0x10] sm:$0xff]
    %v45 = vld [vmem:[#allocation5 + $0x18] sm:$0xff]
    %v46 = vld [vmem:[%s2] sm:$0x1]
    %v48 = vlaneseq
    %v49 = vshrl.u32 %v48, 7
    %v50 = vsub.s32 0, %v49
    %v51 = vrot.slane %v46, %v50
    %vm53 = vcmask 261120
    %v55 = vsel %vm53, %v41, 0
    %57 = vmatprep.subr.mxu0 0.0
    %58 = vmatpush1.msra.mxu0 0.0
    %59 = vmatprep.subr.mxu0 0.0
    %60 = vmatpush1.msra.mxu0 0.0
    %61 = vmatprep.subr.mxu0 0.0
    %62 = vmatpush1.msra.mxu0 0.0
    %63 = vmatprep.subr.mxu0 0.0
    %64 = vmatpush1.msra.mxu0 0.0
    %65 = vmatprep.subr.mxu0 0.0
    %66 = vmatpush1.msra.mxu0 0.0
    %67 = vmatprep.subr.mxu0 0.0
    %68 = vmatpush1.msra.mxu0 0.0
    %69 = vmatprep.subr.mxu0 0.0
    %70 = vmatpush1.msra.mxu0 0.0
    %71 = vmatprep.subr.mxu0 0.0
    %72 = vmatpush1.msra.mxu0 0.0
    %73 = vmatprep.subr.mxu0 0.0
    %74 = vmatpush1.msra.mxu0 0.0
    %75 = vmatprep.subr.mxu0 0.0
    %76 = vmatpush1.msra.mxu0 0.0
    %77 = vmatprep.subr.mxu0 0.0
    %78 = vmatpush1.msra.mxu0 0.0
    %79 = vmatprep.subr.mxu0 0.0
    %80 = vmatpush1.msra.mxu0 0.0
    %81 = vmatprep.subr.mxu0 0.0
    %82 = vmatpush1.msra.mxu0 %v45
    %83 = vmatprep.subr.mxu0 0.0
    %84 = vmatpush1.msra.mxu0 %v44
    %85 = vmatprep.subr.mxu0 0.0
    %86 = vmatpush1.msra.mxu0 %v43
    %87 = vmatprep.subr.mxu0 0.0
    %88 = vmatpush1.msra.mxu0 %v42
    %89 = vmatprep.subr.mxu0 0.0
    %90 = vmatpush2.msra.mxu0 0.0
    %91 = vmatprep.subr.mxu0 0.0
    %92 = vmatpush2.msra.mxu0 0.0
    %93 = vmatprep.subr.mxu0 0.0
    %94 = vmatpush2.msra.mxu0 0.0
    %95 = vmatprep.subr.mxu0 0.0
    %96 = vmatpush2.msra.mxu0 0.0
    %97 = vmatprep.subr.mxu0 0.0
    %98 = vmatpush2.msra.mxu0 0.0
    %99 = vmatprep.subr.mxu0 0.0
    %100 = vmatpush2.msra.mxu0 0.0
    %101 = vmatprep.subr.mxu0 0.0
    %102 = vmatpush2.msra.mxu0 0.0
    %103 = vmatprep.subr.mxu0 0.0
    %104 = vmatpush2.msra.mxu0 0.0
    %105 = vmatprep.subr.mxu0 0.0
    %106 = vmatpush2.msra.mxu0 0.0
    %107 = vmatprep.subr.mxu0 0.0
    %108 = vmatpush2.msra.mxu0 0.0
    %109 = vmatprep.subr.mxu0 0.0
    %110 = vmatpush2.msra.mxu0 0.0
    %111 = vmatprep.subr.mxu0 0.0
    %112 = vmatpush2.msra.mxu0 0.0
    %113 = vmatprep.subr.mxu0 0.0
    %114 = vmatpush2.msra.mxu0 0.0
    %115 = vmatprep.subr.mxu0 0.0
    %116 = vmatpush2.msra.mxu0 0.0
    %117 = vmatprep.subr.mxu0 0.0
    %118 = vmatpush2.msra.mxu0 0.0
    %119 = vmatprep.subr.mxu0 0.0
    %120 = vmatpush2.msra.mxu0 0.0
    %121 = vmatprep.mubr.f32.mxu0 0.0
    %122 = vmatmul.mubr.f32.gmra.mxu0 %v55
    %v123 = vpop.f32.mrf.mxu0
    %v124 = vadd.f32 %v51, %v123
    %v125 = vpop.f32.mrf.mxu0
    %126 = vdwg.mxu0
    %127 = vst [vmem:[#allocation7] sm:$0xff] %v124
    // Predicated region
    $region22: #{tpu_custom_call.1} parent=1 // pred_check
      _
    $region23: #{tpu_custom_call.1} parent=1 // pred_check_branch
      %129 = sbr.rel (0) target = $region25
    $region24: #{tpu_custom_call.1} parent=1 // pred_region
      %s131 = ssub.s32 128, 128
      %132 = vsyncadd [#allocation4], %s131
      %s134 = sshll.u32 [#allocation7], 4
      %s135 = int_to_ptr.vmem [resolvable:$true] %s134
      %137 = dma.vmem_to_hbm [thread:$0]  %s135, 128, %s3, [#allocation4]
    $region25: #{tpu_custom_call.1} parent=1 // pred_fallthru
      _
    // Predicated region
    $region26: #{tpu_custom_call.1} parent=1 // pred_check
      _
    $region27: #{tpu_custom_call.1} parent=1 // pred_check_branch
      %139 = sbr.rel (0) target = $region29
    $region28: #{tpu_custom_call.1} parent=1 // pred_region
      %140 = dma.done [#allocation4], 128
    $region29: #{tpu_custom_call.1} parent=1 // pred_fallthru
      _
    %141 = vsyncpa [#allocation3], 1
    %142 = vsyncpa [#allocation6], 1
    %143 = vsyncpa [#allocation4], 1

</llo_original>
